<compile_context>
chip_gen: v7x
topology: tpu7x:2x2x1
jax: 0.10.0
libtpu: 0.0.40
codegen_flags: <defaults>
</compile_context>

<pallas_src>
import jax
import jax.numpy as jnp
from jax import lax
from jax.experimental import pallas as pl
from jax.experimental.pallas import tpu as pltpu

_INV_SQRT2 = 0.7071067811865476
_SQRT_2_OVER_PI = 0.7978845608028654


def _round_up(x, m):
    return (x + m - 1) // m * m


def _vmem_physical_bytes():
    # Per-core physical VMEM. Fall back to the smallest current value (v7x:
    # 64 MiB) if the query is unavailable, so sizing stays conservative.
    try:
        return int(pltpu.get_tpu_info().vmem_capacity_bytes)
    except Exception:
        return 64 * 1024 * 1024


def _choose_pack(emb_dim, target_lanes=256):
    """Smallest row-packing factor P such that P*emb_dim is lane-dense."""
    if emb_dim % 128 == 0:
        return 1                      # already lane-dense, no packing needed
    p = max(1, target_lanes // emb_dim)
    while (p * emb_dim) % 128 != 0 and p < 128:
        p += 1
    if (p * emb_dim) % 128 != 0:
        return 1                      # give up: full-width block is still valid
    return p


def _block_diag(w, p):
    """(din, dout) -> (p*din, p*dout) with `w` repeated on the diagonal."""
    if p == 1:
        return w
    din, dout = w.shape
    eye = jnp.eye(p, dtype=w.dtype)
    bd = eye[:, None, :, None] * w[None, :, None, :]
    return bd.reshape(p * din, p * dout)


def _make_kernel(approximate_gelu):
    def kernel(x_ref, w1_ref, b1_ref, w2_ref, b2_ref, o_ref):
        # h = x @ W1 + b1 (native-dtype operands to the MXU, f32 accumulate;
        # b1 is already f32 / pre-tiled).
        h = jnp.dot(x_ref[...], w1_ref[...], preferred_element_type=jnp.float32)
        h = h + b1_ref[...]

        if approximate_gelu:
            # tanh-approx GELU: single EUP push instead of a long erf VALU
            # polynomial. NOT bit-exact with torch nn.GELU() default.
            g = 0.5 * h * (1.0 + jnp.tanh(
                _SQRT_2_OVER_PI * (h + 0.044715 * (h * h * h))))
        else:
            # Exact (erf) GELU in f32 -- matches PyTorch nn.GELU() default.
            g = 0.5 * h * (1.0 + lax.erf(h * _INV_SQRT2))

        # out = g @ W2 + b2; cast activations to the weight dtype so bf16
        # weights still feed the MXU natively (no-op when everything is f32).
        out = jnp.dot(g.astype(w2_ref.dtype), w2_ref[...],
                      preferred_element_type=jnp.float32)
        out = out + b2_ref[...]
        o_ref[...] = out.astype(o_ref.dtype)

    return kernel


def embed_fc(x, w1, b1, w2, b2, *, block_rows=None, pack=None,
             approximate_gelu=False):
    """Pallas EmbedFC forward.

    x : any shape whose elements reshape to (-1, input_dim)
    w1: (input_dim, emb_dim), b1: (emb_dim,) or (1, emb_dim)
    w2: (emb_dim,  emb_dim), b2: (emb_dim,) or (1, emb_dim)
    block_rows: optional logical rows per grid step (auto-sized otherwise).
    pack: optional row-packing factor (auto-chosen otherwise; 1 disables).
    """
    input_dim, emb_dim = w1.shape
    assert w2.shape == (emb_dim, emb_dim)
    b1 = jnp.asarray(b1).reshape(1, emb_dim)
    b2 = jnp.asarray(b2).reshape(1, emb_dim)

    x2 = x.reshape(-1, input_dim)             # == torch x.view(-1, input_dim)
    batch = x2.shape[0]
    out_dtype = x2.dtype
    itemsize = x2.dtype.itemsize

    # ---- row packing: fold P logical rows into one lane-dense packed row ----
    if pack is None:
        pack = _choose_pack(emb_dim)
    pack = max(1, int(pack))

    batch_pad = _round_up(batch, pack)
    if batch_pad != batch:
        x2 = jnp.pad(x2, ((0, batch_pad - batch), (0, 0)))
    bp = batch_pad // pack                     # packed rows
    in_cols = pack * input_dim
    out_cols = pack * emb_dim
    xp = x2.reshape(bp, in_cols)               # contiguous, free reshape

    w1p = _block_diag(w1, pack)                # (P*in, P*emb) block-diagonal
    w2p = _block_diag(w2, pack)                # (P*emb, P*emb) block-diagonal
    b1p = jnp.tile(b1.astype(jnp.float32), (1, pack))   # pre-cast + pre-tiled
    b2p = jnp.tile(b2.astype(jnp.float32), (1, pack))

    # ---- batch-tile sizing against a per-chip VMEM budget -------------------
    # Per packed row: streamed x + out tiles (double-buffered) plus ~4 f32
    # intermediates of width out_cols (h, gelu, f32 out, slack).
    stream_row = (in_cols + out_cols) * itemsize
    live_row = 2 * stream_row + 4 * out_cols * 4
    phys = _vmem_physical_bytes()
    budget = min(phys // 3, 32 * 1024 * 1024)

    if block_rows is not None:
        tm = max(1, int(block_rows) // pack)
    else:
        tm = max(8, budget // live_row)
        # Keep >=4 grid steps for large batches so v7x's 2 TensorCores both
        # get work via the "parallel" axis (harmless on 1-TC v5e/v6e).
        tm = min(tm, pl.cdiv(bp, 4))
    tm = min(_round_up(max(tm, 1), 8), _round_up(bp, 8))
    grid = (pl.cdiv(bp, tm),)

    weight_bytes = (w1p.size * w1p.dtype.itemsize
                    + w2p.size * w2p.dtype.itemsize
                    + (b1p.size + b2p.size) * 4)
    needed = tm * live_row + 2 * weight_bytes          # 2x: double-buffered
    vmem_limit = int(max(needed + (8 << 20), 32 << 20))

    def resident(shape):
        # Whole-array block with constant index_map -> stays in VMEM across
        # all grid steps (weights / biases are never re-DMA'd).
        return pl.BlockSpec(shape, lambda i: (0, 0))

    out_packed = pl.pallas_call(
        _make_kernel(approximate_gelu),
        out_shape=jax.ShapeDtypeStruct((bp, out_cols), out_dtype),
        grid=grid,
        in_specs=[
            pl.BlockSpec((tm, in_cols), lambda i: (i, 0)),   # x: batch-tiled
            resident(w1p.shape),
            resident(b1p.shape),
            resident(w2p.shape),
            resident(b2p.shape),
        ],
        out_specs=pl.BlockSpec((tm, out_cols), lambda i: (i, 0)),
        compiler_params=pltpu.CompilerParams(
            dimension_semantics=("parallel",),   # megacore sharding on v7x
            vmem_limit_bytes=vmem_limit),
    )(xp, w1p, b1p, w2p, b2p)

    out = out_packed.reshape(batch_pad, emb_dim)
    if batch_pad != batch:
        out = out[:batch]
    return out


def _reference(x, w1, b1, w2, b2):
    x2 = x.reshape(-1, w1.shape[0]).astype(jnp.float32)
    h = x2 @ w1.astype(jnp.float32) + jnp.asarray(b1, jnp.float32).reshape(1, -1)
    g = 0.5 * h * (1.0 + lax.erf(h * _INV_SQRT2))
    return g @ w2.astype(jnp.float32) + jnp.asarray(b2, jnp.float32).reshape(1, -1)


if __name__ == "__main__":
    input_dim, emb_dim = 4, 32

    key = jax.random.PRNGKey(0)
    kx, k1, k2, k3, k4, kx2, kx3 = jax.random.split(key, 7)

    # Deterministic synthetic parameters (shapes from nn.Linear in __init__).
    w1 = jax.random.normal(k1, (input_dim, emb_dim), dtype=jnp.float32) * 0.1
    b1 = jax.random.normal(k2, (1, emb_dim), dtype=jnp.float32) * 0.1
    w2 = jax.random.normal(k3, (emb_dim, emb_dim), dtype=jnp.float32) * 0.1
    b2 = jax.random.normal(k4, (1, emb_dim), dtype=jnp.float32) * 0.1

    # 1) Tiny batch -> with auto pack (P=8) this is one packed row, one step.
    x_small = jax.random.normal(kx, (8, input_dim), dtype=jnp.float32)
    out_small = jax.block_until_ready(embed_fc(x_small, w1, b1, w2, b2))
    ref_small = _reference(x_small, w1, b1, w2, b2)
    assert out_small.shape == (8, emb_dim)
    assert jnp.allclose(out_small, ref_small, atol=1e-5, rtol=1e-5)

    # 2) Ragged batch that is NOT a multiple of the pack factor, with a small
    #    forced tile: exercises pad/slice, the multi-step pipelined grid, and
    #    trailing-block padding.
    x_big = jax.random.normal(kx2, (203, input_dim), dtype=jnp.float32)
    out_big = jax.block_until_ready(
        embed_fc(x_big, w1, b1, w2, b2, block_rows=64))
    ref_big = _reference(x_big, w1, b1, w2, b2)
    assert out_big.shape == (203, emb_dim)
    assert jnp.allclose(out_big, ref_big, atol=1e-5, rtol=1e-5)

    # 3) Packing disabled (lane-sparse fallback path) still matches.
    x_np = jax.random.normal(kx3, (32, input_dim), dtype=jnp.float32)
    out_np = jax.block_until_ready(embed_fc(x_np, w1, b1, w2, b2, pack=1))
    ref_np = _reference(x_np, w1, b1, w2, b2)
    assert out_np.shape == (32, emb_dim)
    assert jnp.allclose(out_np, ref_np, atol=1e-5, rtol=1e-5)

    print("KERNEL_OK")
</pallas_src>

<mosaic_0001>
module attributes {stable_mosaic.version = 11 : i64} {
  func.func @kernel(%arg0: i32, %arg1: memref<8x32xf32, #tpu.memory_space<vmem>>, %arg2: memref<32x256xf32, #tpu.memory_space<vmem>>, %arg3: memref<1x256xf32, #tpu.memory_space<vmem>>, %arg4: memref<256x256xf32, #tpu.memory_space<vmem>>, %arg5: memref<1x256xf32, #tpu.memory_space<vmem>>, %arg6: memref<8x256xf32, #tpu.memory_space<vmem>>) attributes {dimension_semantics = [#tpu.dimension_semantics<parallel>], iteration_bounds = array<i64: 1>, scalar_prefetch = 0 : i64, scratch_operands = 0 : i64, tpu.core_type = #tpu.core_type<tc>, window_params = [{transform_indices = @transform_0, window_bounds = array<i64: 8, 32>}, {pipeline_mode = #tpu.pipeline_mode<synchronous>, transform_indices = @transform_1, window_bounds = array<i64: 32, 256>}, {pipeline_mode = #tpu.pipeline_mode<synchronous>, transform_indices = @transform_2, window_bounds = array<i64: 1, 256>}, {pipeline_mode = #tpu.pipeline_mode<synchronous>, transform_indices = @transform_3, window_bounds = array<i64: 256, 256>}, {pipeline_mode = #tpu.pipeline_mode<synchronous>, transform_indices = @transform_4, window_bounds = array<i64: 1, 256>}, {transform_indices = @transform_5, window_bounds = array<i64: 8, 256>}]} {
    %c0 = arith.constant 0 : index
    %c0_0 = arith.constant 0 : index
    %0 = vector.load %arg1[%c0, %c0_0] : memref<8x32xf32, #tpu.memory_space<vmem>>, vector<8x32xf32>
    %c0_1 = arith.constant 0 : index
    %c0_2 = arith.constant 0 : index
    %1 = vector.load %arg2[%c0_1, %c0_2] : memref<32x256xf32, #tpu.memory_space<vmem>>, vector<32x256xf32>
    %cst = arith.constant dense<0.000000e+00> : vector<8x256xf32>
    %2 = tpu.matmul %0, %1, %cst {dimension_numbers = #tpu.dot_dimension_numbers<[1], [0], [0], [1], [0, 0, 1, 1], [], []>} : vector<8x32xf32>, vector<32x256xf32>, vector<8x256xf32> -> vector<8x256xf32>
    %c0_3 = arith.constant 0 : index
    %c0_4 = arith.constant 0 : index
    %3 = vector.load %arg3[%c0_3, %c0_4] : memref<1x256xf32, #tpu.memory_space<vmem>>, vector<1x256xf32>
    %4 = vector.broadcast %3 : vector<1x256xf32> to vector<8x256xf32>
    %5 = arith.addf %2, %4 : vector<8x256xf32>
    %cst_5 = arith.constant 5.000000e-01 : f32
    %6 = vector.broadcast %cst_5 : f32 to vector<8x256xf32>
    %7 = arith.mulf %6, %5 : vector<8x256xf32>
    %cst_6 = arith.constant 0.707106769 : f32
    %8 = vector.broadcast %cst_6 : f32 to vector<8x256xf32>
    %9 = arith.mulf %5, %8 : vector<8x256xf32>
    %10 = math.erf %9 : vector<8x256xf32>
    %cst_7 = arith.constant 1.000000e+00 : f32
    %11 = vector.broadcast %cst_7 : f32 to vector<8x256xf32>
    %12 = arith.addf %11, %10 : vector<8x256xf32>
    %13 = arith.mulf %7, %12 : vector<8x256xf32>
    %c0_8 = arith.constant 0 : index
    %c0_9 = arith.constant 0 : index
    %14 = vector.load %arg4[%c0_8, %c0_9] : memref<256x256xf32, #tpu.memory_space<vmem>>, vector<256x256xf32>
    %cst_10 = arith.constant dense<0.000000e+00> : vector<8x256xf32>
    %15 = tpu.matmul %13, %14, %cst_10 {dimension_numbers = #tpu.dot_dimension_numbers<[1], [0], [0], [1], [0, 0, 1, 1], [], []>} : vector<8x256xf32>, vector<256x256xf32>, vector<8x256xf32> -> vector<8x256xf32>
    %c0_11 = arith.constant 0 : index
    %c0_12 = arith.constant 0 : index
    %16 = vector.load %arg5[%c0_11, %c0_12] : memref<1x256xf32, #tpu.memory_space<vmem>>, vector<1x256xf32>
    %17 = vector.broadcast %16 : vector<1x256xf32> to vector<8x256xf32>
    %18 = arith.addf %15, %17 : vector<8x256xf32>
    %c0_13 = arith.constant 0 : index
    %c0_14 = arith.constant 0 : index
    %19 = vector.load %arg6[%c0_13, %c0_14] : memref<8x256xf32, #tpu.memory_space<vmem>>, vector<8x256xf32>
    tpu.vector_store %arg6[%c0_13, %c0_14], %18 {strides = array<i32>} : memref<8x256xf32, #tpu.memory_space<vmem>>, vector<8x256xf32>,
    return
  }
  func.func @transform_0(%arg0: i32) -> (i32, i32) {
    %c0_i32 = arith.constant 0 : i32
    %c0_i32_0 = arith.constant 0 : i32
    return %arg0, %c0_i32 : i32, i32
  }
  func.func @transform_1(%arg0: i32) -> (i32, i32) {
    %c0_i32 = arith.constant 0 : i32
    %c0_i32_0 = arith.constant 0 : i32
    %c0_i32_1 = arith.constant 0 : i32
    return %c0_i32, %c0_i32_0 : i32, i32
  }
  func.func @transform_2(%arg0: i32) -> (i32, i32) {
    %c0_i32 = arith.constant 0 : i32
    %c0_i32_0 = arith.constant 0 : i32
    %c0_i32_1 = arith.constant 0 : i32
    return %c0_i32, %c0_i32_0 : i32, i32
  }
  func.func @transform_3(%arg0: i32) -> (i32, i32) {
    %c0_i32 = arith.constant 0 : i32
    %c0_i32_0 = arith.constant 0 : i32
    %c0_i32_1 = arith.constant 0 : i32
    return %c0_i32, %c0_i32_0 : i32, i32
  }
  func.func @transform_4(%arg0: i32) -> (i32, i32) {
    %c0_i32 = arith.constant 0 : i32
    %c0_i32_0 = arith.constant 0 : i32
    %c0_i32_1 = arith.constant 0 : i32
    return %c0_i32, %c0_i32_0 : i32, i32
  }
  func.func @transform_5(%arg0: i32) -> (i32, i32) {
    %c0_i32 = arith.constant 0 : i32
    %c0_i32_0 = arith.constant 0 : i32
    return %arg0, %c0_i32 : i32, i32
  }
}

</mosaic_0001>

<llo_original>
// kernel: tpu_custom_call.1
$region0: #{tpu_custom_call.1}
  #allocation0 [shape = 'u32[]', space=smem, size = 0x4, offset = 0x4, fixed_abs, tag = 'smem constant byte address 0x4 - core index']
  #allocation1 [shape = 'u32[144,128]{1,0:T(1,128)}', space=vmem, size = 0x12000, scoped, tag = 'internal scratch']
  %s0 = inlined_call_operand.hbm [shape: f32[1,32], index: 0, kind: input, shape index: {}]
  %s1 = inlined_call_operand.hbm [shape: f32[32,256], index: 1, kind: input, shape index: {}]
  %s2 = inlined_call_operand.vmem [shape: f32[1,256], index: 2, kind: input, shape index: {}]
  %s3 = inlined_call_operand.hbm [shape: f32[256,256], index: 3, kind: input, shape index: {}]
  %s4 = inlined_call_operand.vmem [shape: f32[1,256], index: 4, kind: input, shape index: {}]
  %s5 = inlined_call_operand.hbm [shape: f32[1,256], index: 5, kind: output, shape index: {}]
  %s6 = sld [smem:[#allocation0]]
  $region42: #{tpu_custom_call.1} parent=0
    _
  %s8 = ssub.s32 1, %s6
  %s9 = scalar_select 0, %s8, %s6
  $region1: #{tpu_custom_call.1} parent=0
    #allocation2 [shape = 'u8[4096]{0}', space=vmem, size = 0x1000, scoped, tag = 'input window, operand 0, single buffered']
    #allocation3 [shape = 's32[1]{0}', space=sflag, size = 0x4, scoped, tag = 'scoped memory for tpu_custom_call.1']
    #allocation4 [shape = 's32[1]{0}', space=sflag, size = 0x4, scoped, tag = 'scoped memory for tpu_custom_call.1']
    #allocation5 [shape = 'u8[32768]{0}', space=vmem, size = 0x8000, scoped, tag = 'input window, operand 1, single buffered']
    #allocation6 [shape = 's32[1]{0}', space=sflag, size = 0x4, scoped, tag = 'scoped memory for tpu_custom_call.1']
    #allocation7 [shape = 'u8[262144]{0}', space=vmem, size = 0x40000, scoped, tag = 'input window, operand 3, single buffered']
    #allocation8 [shape = 'u8[8192]{0}', space=vmem, size = 0x2000, scoped, tag = 'output window, operand 0, single buffered']
    %10 = vsyncpa [#allocation3], 0
    %11 = vsyncpa [#allocation6], 0
    %12 = vsyncpa [#allocation4], 0
    // Predicated region
    $region2: #{tpu_custom_call.1} parent=1 // pred_check
      _
    $region3: #{tpu_custom_call.1} parent=1 // pred_check_branch
      %14 = sbr.rel (0) target = $region5
    $region4: #{tpu_custom_call.1} parent=1 // pred_region
      %s16 = ssub.s32 128, 16
      %17 = vsyncadd [#allocation3], %s16
      %s18 = sshll.u32 [#allocation2], 4
      %s19 = int_to_ptr.vmem [resolvable:$true] %s18
      %24 = dma.hbm_to_vmem [thread:$0]  %s0, 16, %s19, [#allocation3], 16, 16, 1
    $region5: #{tpu_custom_call.1} parent=1 // pred_fallthru
      _
    // Predicated region
    $region6: #{tpu_custom_call.1} parent=1 // pred_check
      _
    $region7: #{tpu_custom_call.1} parent=1 // pred_check_branch
      %26 = sbr.rel (0) target = $region9
    $region8: #{tpu_custom_call.1} parent=1 // pred_region
      %s28 = ssub.s32 1024, 1024
      %29 = vsyncadd [#allocation6], %s28
      %s30 = sshll.u32 [#allocation5], 4
      %s31 = int_to_ptr.vmem [resolvable:$true] %s30
      %36 = dma.hbm_to_vmem [thread:$0]  %s1, 1024, %s31, [#allocation6], 256, 256, 16
    $region9: #{tpu_custom_call.1} parent=1 // pred_fallthru
      _
    // Predicated region
    $region10: #{tpu_custom_call.1} parent=1 // pred_check
      _
    $region11: #{tpu_custom_call.1} parent=1 // pred_check_branch
      %38 = sbr.rel (0) target = $region13
    $region12: #{tpu_custom_call.1} parent=1 // pred_region
      _
    $region13: #{tpu_custom_call.1} parent=1 // pred_fallthru
      _
    // Predicated region
    $region14: #{tpu_custom_call.1} parent=1 // pred_check
      _
    $region15: #{tpu_custom_call.1} parent=1 // pred_check_branch
      %40 = sbr.rel (0) target = $region17
    $region16: #{tpu_custom_call.1} parent=1 // pred_region
      %s42 = ssub.s32 8192, 8192
      %43 = vsyncadd [#allocation6], %s42
      %s44 = sshll.u32 [#allocation7], 4
      %s45 = int_to_ptr.vmem [resolvable:$true] %s44
      %50 = dma.hbm_to_vmem [thread:$0]  %s3, 8192, %s45, [#allocation6], 256, 256, 16
    $region17: #{tpu_custom_call.1} parent=1 // pred_fallthru
      _
    // Predicated region
    $region18: #{tpu_custom_call.1} parent=1 // pred_check
      _
    $region19: #{tpu_custom_call.1} parent=1 // pred_check_branch
      %52 = sbr.rel (0) target = $region21
    $region20: #{tpu_custom_call.1} parent=1 // pred_region
      _
    $region21: #{tpu_custom_call.1} parent=1 // pred_fallthru
      _
    // Predicated region
    $region22: #{tpu_custom_call.1} parent=1 // pred_check
      _
    $region23: #{tpu_custom_call.1} parent=1 // pred_check_branch
      %54 = sbr.rel (0) target = $region25
    $region24: #{tpu_custom_call.1} parent=1 // pred_region
      %55 = dma.done [#allocation3], 128
    $region25: #{tpu_custom_call.1} parent=1 // pred_fallthru
      _
    // Predicated region
    $region26: #{tpu_custom_call.1} parent=1 // pred_check
      _
    $region27: #{tpu_custom_call.1} parent=1 // pred_check_branch
      %57 = sbr.rel (0) target = $region29
    $region28: #{tpu_custom_call.1} parent=1 // pred_region
      %58 = dma.done [#allocation6], 1024
    $region29: #{tpu_custom_call.1} parent=1 // pred_fallthru
      _
    // Predicated region
    $region30: #{tpu_custom_call.1} parent=1 // pred_check
      _
    $region31: #{tpu_custom_call.1} parent=1 // pred_check_branch
      %60 = sbr.rel (0) target = $region33
    $region32: #{tpu_custom_call.1} parent=1 // pred_region
      %61 = dma.done [#allocation6], 8192
    $region33: #{tpu_custom_call.1} parent=1 // pred_fallthru
      _
    %v62 = vld [vmem:[#allocation2] sm:$0xff]
    %v63 = vld [vmem:[#allocation5] sm:$0xff]
    %v64 = vld [vmem:[#allocation5 + $0x8] sm:$0xff]
    %v65 = vld [vmem:[#allocation5 + $0x10] sm:$0xff]
    %v66 = vld [vmem:[#allocation5 + $0x18] sm:$0xff]
    %v67 = vld [vmem:[#allocation5 + $0x20] sm:$0xff]
    %v68 = vld [vmem:[#allocation5 + $0x28] sm:$0xff]
    %v69 = vld [vmem:[#allocation5 + $0x30] sm:$0xff]
    %v70 = vld [vmem:[#allocation5 + $0x38] sm:$0xff]
    %v71 = vld [vmem:[%s2] sm:$0x3]
    %v73 = vlaneseq
    %v74 = vshrl.u32 %v73, 7
    %v75 = vsub.s32 0, %v74
    %v76 = vrot.slane %v71, %v75
    %v77 = vlaneseq
    %v78 = vshrl.u32 %v77, 7
    %v79 = vsub.s32 1, %v78
    %v80 = vrot.slane %v71, %v79
    %vm83 = vcmask 261120
    %v85 = vsel %vm83, %v62, 0
    %87 = vmatprep.subr.mxu0 %v64
    %88 = vmatpush1.msra.mxu0 %v63
    %89 = vmatprep.subr.mxu0 %v66
    %90 = vmatpush1.msra.mxu0 %v65
    %91 = vmatprep.subr.mxu0 %v68
    %92 = vmatpush1.msra.mxu0 %v67
    %93 = vmatprep.subr.mxu0 %v70
    %94 = vmatpush1.msra.mxu0 %v69
    %95 = vmatprep.subr.mxu0 0.0
    %96 = vmatpush1.msra.mxu0 0.0
    %97 = vmatprep.subr.mxu0 0.0
    %98 = vmatpush1.msra.mxu0 0.0
    %99 = vmatprep.subr.mxu0 0.0
    %100 = vmatpush1.msra.mxu0 0.0
    %101 = vmatprep.subr.mxu0 0.0
    %102 = vmatpush1.msra.mxu0 0.0
    %103 = vmatprep.subr.mxu0 0.0
    %104 = vmatpush1.msra.mxu0 0.0
    %105 = vmatprep.subr.mxu0 0.0
    %106 = vmatpush1.msra.mxu0 0.0
    %107 = vmatprep.subr.mxu0 0.0
    %108 = vmatpush1.msra.mxu0 0.0
    %109 = vmatprep.subr.mxu0 0.0
    %110 = vmatpush1.msra.mxu0 0.0
    %111 = vmatprep.subr.mxu0 0.0
    %112 = vmatpush1.msra.mxu0 0.0
    %113 = vmatprep.subr.mxu0 0.0
    %114 = vmatpush1.msra.mxu0 0.0
    %115 = vmatprep.subr.mxu0 0.0
    %116 = vmatpush1.msra.mxu0 0.0
    %117 = vmatprep.subr.mxu0 0.0
    %118 = vmatpush1.msra.mxu0 0.0
    %119 = vmatprep.subr.mxu0 0.0
    %120 = vmatpush1.msra.mxu0 0.0
    %121 = vmatprep.subr.mxu0 0.0
    %122 = vmatpush1.msra.mxu0 0.0
    %123 = vmatprep.subr.mxu0 0.0
    %124 = vmatpush1.msra.mxu0 0.0
    %125 = vmatprep.subr.mxu0 0.0
    %126 = vmatpush1.msra.mxu0 0.0
    %127 = vmatprep.subr.mxu0 0.0
    %128 = vmatpush1.msra.mxu0 0.0
    %129 = vmatprep.subr.mxu0 0.0
    %130 = vmatpush1.msra.mxu0 0.0
    %131 = vmatprep.subr.mxu0 0.0
    %132 = vmatpush1.msra.mxu0 0.0
    %133 = vmatprep.subr.mxu0 0.0
    %134 = vmatpush1.msra.mxu0 0.0
    %135 = vmatprep.subr.mxu0 0.0
    %136 = vmatpush1.msra.mxu0 0.0
    %137 = vmatprep.subr.mxu0 0.0
    %138 = vmatpush1.msra.mxu0 0.0
    %139 = vmatprep.subr.mxu0 0.0
    %140 = vmatpush1.msra.mxu0 0.0
    %141 = vmatprep.subr.mxu0 0.0
    %142 = vmatpush1.msra.mxu0 0.0
    %143 = vmatprep.subr.mxu0 0.0
    %144 = vmatpush1.msra.mxu0 0.0
    %145 = vmatprep.subr.mxu0 0.0
    %146 = vmatpush1.msra.mxu0 0.0
    %147 = vmatprep.subr.mxu0 0.0
    %148 = vmatpush1.msra.mxu0 0.0
    %149 = vmatprep.subr.mxu0 0.0
    %150 = vmatpush1.msra.mxu0 0.0
    %151 = vmatprep.mubr.f32.mxu0 0.0
    %152 = vmatmul.mubr.f32.gmra.mrb[0].mxu0 %v85
    %v153 = vpop.f32.mrb[0].mxu0
    %v154 = vadd.f32 %v76, %v153
    %v155 = vpop.f32.mrb[0].mxu0
    %v156 = vadd.f32 %v80, %v155
    %157 = vdwg.mxu0
    %v158 = vmul.f32 %v154, 0.5
    %v159 = vmul.f32 %v156, 0.5
    %v160 = vmul.f32 %v154, 0.70710677
    %v161 = vmul.f32 %v156, 0.70710677
    %v162 = verf.f32.pop %v160
    %v163 = verf.f32.pop %v161
    %v164 = vadd.f32 %v162, 1.0
    %v165 = vadd.f32 %v163, 1.0
    %v166 = vmul.f32 %v158, %v164
    %v167 = vmul.f32 %v159, %v165
    %v168 = vld [vmem:[#allocation7] sm:$0xff]
    %v169 = vld [vmem:[#allocation7 + $0x8] sm:$0xff]
    %v170 = vld [vmem:[#allocation7 + $0x10] sm:$0xff]
    %v171 = vld [vmem:[#allocation7 + $0x18] sm:$0xff]
    %v172 = vld [vmem:[#allocation7 + $0x20] sm:$0xff]
    %v173 = vld [vmem:[#allocation7 + $0x28] sm:$0xff]
    %v174 = vld [vmem:[#allocation7 + $0x30] sm:$0xff]
    %v175 = vld [vmem:[#allocation7 + $0x38] sm:$0xff]
    %v176 = vld [vmem:[#allocation7 + $0x40] sm:$0xff]
    %v177 = vld [vmem:[#allocation7 + $0x48] sm:$0xff]
    %v178 = vld [vmem:[#allocation7 + $0x50] sm:$0xff]
    %v179 = vld [vmem:[#allocation7 + $0x58] sm:$0xff]
    %v180 = vld [vmem:[#allocation7 + $0x60] sm:$0xff]
    %v181 = vld [vmem:[#allocation7 + $0x68] sm:$0xff]
    %v182 = vld [vmem:[#allocation7 + $0x70] sm:$0xff]
    %v183 = vld [vmem:[#allocation7 + $0x78] sm:$0xff]
    %v184 = vld [vmem:[#allocation7 + $0x80] sm:$0xff]
    %v185 = vld [vmem:[#allocation7 + $0x88] sm:$0xff]
    %v186 = vld [vmem:[#allocation7 + $0x90] sm:$0xff]
    %v187 = vld [vmem:[#allocation7 + $0x98] sm:$0xff]
    %v188 = vld [vmem:[#allocation7 + $0xa0] sm:$0xff]
    %v189 = vld [vmem:[#allocation7 + $0xa8] sm:$0xff]
    %v190 = vld [vmem:[#allocation7 + $0xb0] sm:$0xff]
    %v191 = vld [vmem:[#allocation7 + $0xb8] sm:$0xff]
    %v192 = vld [vmem:[#allocation7 + $0xc0] sm:$0xff]
    %v193 = vld [vmem:[#allocation7 + $0xc8] sm:$0xff]
    %v194 = vld [vmem:[#allocation7 + $0xd0] sm:$0xff]
    %v195 = vld [vmem:[#allocation7 + $0xd8] sm:$0xff]
    %v196 = vld [vmem:[#allocation7 + $0xe0] sm:$0xff]
    %v197 = vld [vmem:[#allocation7 + $0xe8] sm:$0xff]
    %v198 = vld [vmem:[#allocation7 + $0xf0] sm:$0xff]
    %v199 = vld [vmem:[#allocation7 + $0xf8] sm:$0xff]
    %v200 = vld [vmem:[#allocation7 + $0x100] sm:$0xff]
    %v201 = vld [vmem:[#allocation7 + $0x108] sm:$0xff]
    %v202 = vld [vmem:[#allocation7 + $0x110] sm:$0xff]
    %v203 = vld [vmem:[#allocation7 + $0x118] sm:$0xff]
    %v204 = vld [vmem:[#allocation7 + $0x120] sm:$0xff]
    %v205 = vld [vmem:[#allocation7 + $0x128] sm:$0xff]
    %v206 = vld [vmem:[#allocation7 + $0x130] sm:$0xff]
    %v207 = vld [vmem:[#allocation7 + $0x138] sm:$0xff]
    %v208 = vld [vmem:[#allocation7 + $0x140] sm:$0xff]
    %v209 = vld [vmem:[#allocation7 + $0x148] sm:$0xff]
    %v210 = vld [vmem:[#allocation7 + $0x150] sm:$0xff]
    %v211 = vld [vmem:[#allocation7 + $0x158] sm:$0xff]
    %v212 = vld [vmem:[#allocation7 + $0x160] sm:$0xff]
    %v213 = vld [vmem:[#allocation7 + $0x168] sm:$0xff]
    %v214 = vld [vmem:[#allocation7 + $0x170] sm:$0xff]
    %v215 = vld [vmem:[#allocation7 + $0x178] sm:$0xff]
    %v216 = vld [vmem:[#allocation7 + $0x180] sm:$0xff]
    %v217 = vld [vmem:[#allocation7 + $0x188] sm:$0xff]
    %v218 = vld [vmem:[#allocation7 + $0x190] sm:$0xff]
    %v219 = vld [vmem:[#allocation7 + $0x198] sm:$0xff]
    %v220 = vld [vmem:[#allocation7 + $0x1a0] sm:$0xff]
    %v221 = vld [vmem:[#allocation7 + $0x1a8] sm:$0xff]
    %v222 = vld [vmem:[#allocation7 + $0x1b0] sm:$0xff]
    %v223 = vld [vmem:[#allocation7 + $0x1b8] sm:$0xff]
    %v224 = vld [vmem:[#allocation7 + $0x1c0] sm:$0xff]
    %v225 = vld [vmem:[#allocation7 + $0x1c8] sm:$0xff]
    %v226 = vld [vmem:[#allocation7 + $0x1d0] sm:$0xff]
    %v227 = vld [vmem:[#allocation7 + $0x1d8] sm:$0xff]
    %v228 = vld [vmem:[#allocation7 + $0x1e0] sm:$0xff]
    %v229 = vld [vmem:[#allocation7 + $0x1e8] sm:$0xff]
    %v230 = vld [vmem:[#allocation7 + $0x1f0] sm:$0xff]
    %v231 = vld [vmem:[#allocation7 + $0x1f8] sm:$0xff]
    %v232 = vld [vmem:[%s4] sm:$0x3]
    %v234 = vlaneseq
    %v235 = vshrl.u32 %v234, 7
    %v236 = vsub.s32 0, %v235
    %v237 = vrot.slane %v232, %v236
    %v238 = vlaneseq
    %v239 = vshrl.u32 %v238, 7
    %v240 = vsub.s32 1, %v239
    %v241 = vrot.slane %v232, %v240
    %244 = vmatprep.subr.mxu0 %v169
    %245 = vmatpush1.msra.mxu0 %v168
    %246 = vmatprep.subr.mxu0 %v171
    %247 = vmatpush1.msra.mxu0 %v170
    %248 = vmatprep.subr.mxu0 %v173
    %249 = vmatpush1.msra.mxu0 %v172
    %250 = vmatprep.subr.mxu0 %v175
    %251 = vmatpush1.msra.mxu0 %v174
    %252 = vmatprep.subr.mxu0 %v177
    %253 = vmatpush1.msra.mxu0 %v176
    %254 = vmatprep.subr.mxu0 %v179
    %255 = vmatpush1.msra.mxu0 %v178
    %256 = vmatprep.subr.mxu0 %v181
    %257 = vmatpush1.msra.mxu0 %v180
    %258 = vmatprep.subr.mxu0 %v183
    %259 = vmatpush1.msra.mxu0 %v182
    %260 = vmatprep.subr.mxu0 %v185
    %261 = vmatpush1.msra.mxu0 %v184
    %262 = vmatprep.subr.mxu0 %v187
    %263 = vmatpush1.msra.mxu0 %v186
    %264 = vmatprep.subr.mxu0 %v189
    %265 = vmatpush1.msra.mxu0 %v188
    %266 = vmatprep.subr.mxu0 %v191
    %267 = vmatpush1.msra.mxu0 %v190
    %268 = vmatprep.subr.mxu0 %v193
    %269 = vmatpush1.msra.mxu0 %v192
    %270 = vmatprep.subr.mxu0 %v195
    %271 = vmatpush1.msra.mxu0 %v194
    %272 = vmatprep.subr.mxu0 %v197
    %273 = vmatpush1.msra.mxu0 %v196
    %274 = vmatprep.subr.mxu0 %v199
    %275 = vmatpush1.msra.mxu0 %v198
    %276 = vmatprep.subr.mxu0 %v201
    %277 = vmatpush1.msra.mxu0 %v200
    %278 = vmatprep.subr.mxu0 %v203
    %279 = vmatpush1.msra.mxu0 %v202
    %280 = vmatprep.subr.mxu0 %v205
    %281 = vmatpush1.msra.mxu0 %v204
    %282 = vmatprep.subr.mxu0 %v207
    %283 = vmatpush1.msra.mxu0 %v206
    %284 = vmatprep.subr.mxu0 %v209
    %285 = vmatpush1.msra.mxu0 %v208
    %286 = vmatprep.subr.mxu0 %v211
    %287 = vmatpush1.msra.mxu0 %v210
    %288 = vmatprep.subr.mxu0 %v213
    %289 = vmatpush1.msra.mxu0 %v212
    %290 = vmatprep.subr.mxu0 %v215
    %291 = vmatpush1.msra.mxu0 %v214
    %292 = vmatprep.subr.mxu0 %v217
    %293 = vmatpush1.msra.mxu0 %v216
    %294 = vmatprep.subr.mxu0 %v219
    %295 = vmatpush1.msra.mxu0 %v218
    %296 = vmatprep.subr.mxu0 %v221
    %297 = vmatpush1.msra.mxu0 %v220
    %298 = vmatprep.subr.mxu0 %v223
    %299 = vmatpush1.msra.mxu0 %v222
    %300 = vmatprep.subr.mxu0 %v225
    %301 = vmatpush1.msra.mxu0 %v224
    %302 = vmatprep.subr.mxu0 %v227
    %303 = vmatpush1.msra.mxu0 %v226
    %304 = vmatprep.subr.mxu0 %v229
    %305 = vmatpush1.msra.mxu0 %v228
    %306 = vmatprep.subr.mxu0 %v231
    %307 = vmatpush1.msra.mxu0 %v230
    %308 = vmatprep.mubr.f32.mxu0 %v167
    %309 = vmatmul.mubr.f32.gmra.mrb[0].mxu0 %v166
    %v310 = vpop.f32.mrb[0].mxu0
    %v311 = vadd.f32 %v237, %v310
    %v312 = vpop.f32.mrb[0].mxu0
    %v313 = vadd.f32 %v241, %v312
    %314 = vdwg.mxu0
    %v317 = vcombine.low %v311, %v313
    %v318 = vcombine.high %v311, %v313
    %v320 = vunpack.c.l.s4 1966171168
    %v321 = vunpack.c.0.s8 %v320
    %v322 = vlaneseq
    %v323 = vshrl.u32 %v322, 7
    %v324 = vsub.s32 %v321, %v323
    %v325 = vrot.slane %v317, %v324
    %v327 = vunpack.c.l.s4 1966171168
    %v328 = vunpack.c.0.s8 %v327
    %v329 = vlaneseq
    %v330 = vshrl.u32 %v329, 7
    %v331 = vsub.s32 %v328, %v330
    %v332 = vrot.slane %v318, %v331
    %v333 = vcombine.high %v325, %v325
    %v334 = vcombine.high %v332, %v332
    %v336 = vunpack.c.l.s4 1966171168
    %v337 = vunpack.c.0.s8 %v336
    %v338 = vlaneseq
    %v339 = vshrl.u32 %v338, 7
    %v340 = vsub.s32 %v337, %v339
    %v341 = vrot.slane %v325, %v340
    %v343 = vunpack.c.l.s4 1966171168
    %v344 = vunpack.c.0.s8 %v343
    %v345 = vlaneseq
    %v346 = vshrl.u32 %v345, 7
    %v347 = vsub.s32 %v344, %v346
    %v348 = vrot.slane %v332, %v347
    %v350 = vunpack.c.l.s4 1966171168
    %v351 = vunpack.c.0.s8 %v350
    %v352 = vlaneseq
    %v353 = vshrl.u32 %v352, 7
    %v354 = vsub.s32 %v351, %v353
    %v355 = vrot.slane %v333, %v354
    %v357 = vunpack.c.l.s4 1966171168
    %v358 = vunpack.c.0.s8 %v357
    %v359 = vlaneseq
    %v360 = vshrl.u32 %v359, 7
    %v361 = vsub.s32 %v358, %v360
    %v362 = vrot.slane %v334, %v361
    %v363 = vcombine.high %v341, %v341
    %v364 = vcombine.high %v348, %v348
    %v365 = vcombine.high %v355, %v355
    %v366 = vcombine.high %v362, %v362
    %v375 = vlaneseq
    %vm376 = vcmp.ge.s32.totalorder %v375, 0
    %vm377 = vcmp.lt.s32.totalorder %v375, 256
    %vm378 = vmand %vm376, %vm377
    %379 = vst.msk [vmem:[#allocation8] sm:$0x3] %vm378, %v341
    %380 = vst.msk [vmem:[#allocation8 + $0x2] sm:$0x3] %vm378, %v355
    %381 = vst.msk [vmem:[#allocation8 + $0x4] sm:$0x3] %vm378, %v363
    %382 = vst.msk [vmem:[#allocation8 + $0x6] sm:$0x3] %vm378, %v365
    %383 = vst.msk [vmem:[#allocation8 + $0x8] sm:$0x3] %vm378, %v348
    %384 = vst.msk [vmem:[#allocation8 + $0xa] sm:$0x3] %vm378, %v362
    %385 = vst.msk [vmem:[#allocation8 + $0xc] sm:$0x3] %vm378, %v364
    %386 = vst.msk [vmem:[#allocation8 + $0xe] sm:$0x3] %vm378, %v366
    // Predicated region
    $region34: #{tpu_custom_call.1} parent=1 // pred_check
      _
    $region35: #{tpu_custom_call.1} parent=1 // pred_check_branch
      %388 = sbr.rel (0) target = $region37
    $region36: #{tpu_custom_call.1} parent=1 // pred_region
      %s390 = ssub.s32 256, 32
      %391 = vsyncadd [#allocation4], %s390
      %s392 = sshll.u32 [#allocation8], 4
      %s393 = int_to_ptr.vmem [resolvable:$true] %s392
      %398 = dma.vmem_to_hbm [thread:$0]  %s393, 32, %s5, [#allocation4], 32, 32, 2
    $region37: #{tpu_custom_call.1} parent=1 // pred_fallthru
      _
    // Predicated region
    $region38: #{tpu_custom_call.1} parent=1 // pred_check
      _
    $region39: #{tpu_custom_call.1} parent=1 // pred_check_branch
      %400 = sbr.rel (0) target = $region41
    $region40: #{tpu_custom_call.1} parent=1 // pred_region
      %401 = dma.done [#allocation4], 256
    $region41: #{tpu_custom_call.1} parent=1 // pred_fallthru
      _
    %402 = vsyncpa [#allocation3], 1
    %403 = vsyncpa [#allocation6], 1
    %404 = vsyncpa [#allocation4], 1

</llo_original>
